<compile_context>
chip_gen: v6e
topology: v6e:2x2x1
jax: 0.10.0
libtpu: 0.0.40
codegen_flags: <defaults>
</compile_context>

<pallas_src>
import functools

import jax
import jax.numpy as jnp
from jax.experimental import pallas as pl
from jax.experimental.pallas import tpu as pltpu


def _row_range(size, i):
    """Row extent (relative to the hex center) of the sub-kernel at column offset +-i."""
    if i == 0:
        return -size, size
    return -(size - i // 2), size - (i + 1) // 2


def _ds(start, size, stride):
    if stride == 1:
        return pl.ds(start, size)
    return pl.ds(start, size, stride=stride)


def _hexpool_kernel(xp_ref, out_even_ref, out_odd_ref, *, size, stride,
                    n_rows, n_odd, n_even):
    """xp_ref: (H+2s, W+2s, BT) zero-padded input tile.
    out_even_ref: (n_rows, n_odd, BT)  -> even output columns (input cols 0, 2*st, ...)
    out_odd_ref : (n_rows, n_even, BT) -> odd output columns  (input cols st, 3*st, ...)
    """
    s, st = size, stride
    first = True
    for i in range(s + 1):                       # static loop over hex sub-kernels
        lo, hi = _row_range(s, i)
        # vertical half-row shift for odd output columns (hex offset coords)
        sh = (i % 2) if (st % 2 == 1) else 0
        for dc in ((0,) if i == 0 else (-i, i)):
            # even output columns: row centers j*st, column centers 2*st*m
            pe = None
            for dr in range(lo, hi + 1):
                v = xp_ref[_ds(s + dr, n_rows, st),
                           _ds(s + dc, n_odd, 2 * st), :]
                pe = v if pe is None else jnp.maximum(pe, v)
            # odd output columns: row centers st//2 + j*st (+ parity shift),
            # column centers st + 2*st*m
            po = None
            for dr in range(lo, hi + 1):
                v = xp_ref[_ds(s + st // 2 + sh + dr, n_rows, st),
                           _ds(s + st + dc, n_even, 2 * st), :]
                po = v if po is None else jnp.maximum(po, v)
            if first:
                out_even_ref[...] = pe
                out_odd_ref[...] = po
                first = False
            else:
                out_even_ref[...] = jnp.maximum(out_even_ref[...], pe)
                out_odd_ref[...] = jnp.maximum(out_odd_ref[...], po)


@functools.partial(jax.jit, static_argnames=("size", "stride"))
def hex_maxpool2d(x, size=1, stride=1):
    """Pallas implementation of hexagdly.maxpool2d(size, stride). x: NCHW."""
    n, c, h, w = x.shape
    s, st = size, stride
    assert h - st // 2 >= 0, "Too few rows to apply hex pooling with this stride"
    assert w - 1 - st >= 0, "Too few columns to apply hex pooling with this stride"
    b = n * c
    n_rows = (h - 1 - st // 2) // st + 1
    n_odd = (w - 1) // (2 * st) + 1            # output cols at input cols 0, 2st, ...
    n_even = (w - 1 - st) // (2 * st) + 1      # output cols at input cols st, 3st, ...
    w_out = n_odd + n_even
    hp, wp = h + 2 * s, w + 2 * s
    dtype = x.dtype
    itemsize = jnp.dtype(dtype).itemsize

    # lane-dense fused batch*channel axis: pad B up to a multiple of 128
    b_pad = max(128, ((b + 127) // 128) * 128)
    # pick a B tile so one pipelined step (double-buffered input + outputs)
    # stays well under the scoped-VMEM budget on all chips (v7x: 64 MiB total)
    bytes_per_lane = itemsize * (2 * hp * wp + 2 * n_rows * (n_odd + n_even))
    max_lanes = max(128, (int((20 << 20) // max(bytes_per_lane, 1)) // 128) * 128)
    bt = 128
    for cand in (2048, 1024, 512, 256, 128):
        if cand <= max_lanes and b_pad % cand == 0:
            bt = cand
            break
    vmem_limit = int(min(max(bt * bytes_per_lane + (4 << 20), 16 << 20), 64 << 20))

    # glue (fused by jit): NCHW -> (H, W, B); zero-pad spatially by `size`, pad lanes
    xb = jnp.transpose(x.reshape(b, h, w), (1, 2, 0))
    xp = jnp.pad(xb, ((s, s), (s, s), (0, b_pad - b)))

    kern = functools.partial(_hexpool_kernel, size=s, stride=st,
                             n_rows=n_rows, n_odd=n_odd, n_even=n_even)
    out_even, out_odd = pl.pallas_call(
        kern,
        grid=(b_pad // bt,),
        in_specs=[pl.BlockSpec((hp, wp, bt), lambda k: (0, 0, k))],
        out_specs=(pl.BlockSpec((n_rows, n_odd, bt), lambda k: (0, 0, k)),
                   pl.BlockSpec((n_rows, n_even, bt), lambda k: (0, 0, k))),
        out_shape=(jax.ShapeDtypeStruct((n_rows, n_odd, b_pad), dtype),
                   jax.ShapeDtypeStruct((n_rows, n_even, b_pad), dtype)),
        compiler_params=pltpu.CompilerParams(
            dimension_semantics=("parallel",),
            vmem_limit_bytes=vmem_limit),
    )(xp)

    # glue (fused by jit): interleave even/odd output columns, strip lane pad, back to NCHW
    if n_odd != n_even:                        # n_odd == n_even + 1
        out_odd = jnp.pad(out_odd, ((0, 0), (0, n_odd - n_even), (0, 0)))
    res = jnp.stack([out_even, out_odd], axis=2).reshape(n_rows, 2 * n_odd, b_pad)
    res = res[:, :w_out, :b]
    return jnp.transpose(res, (2, 0, 1)).reshape(n, c, n_rows, w_out)


# ---------------- pure-JAX reference (direct transcription of the torch code) ----------------
def _reference_hexpool(x, size, stride):
    nn_, cc_, h, w = x.shape
    s, st = size, stride

    def pool(inp, kh, kw, dil_w):
        init = jnp.array(-jnp.inf, inp.dtype)
        return jax.lax.reduce_window(
            inp, init, jax.lax.max,
            window_dimensions=(1, 1, kh, kw),
            window_strides=(1, 1, st, 2 * st),
            padding="VALID",
            window_dilation=(1, 1, 1, dil_w))

    def shape_for_odd(i):
        slices, pads = [None] * 4, [0] * 4
        pads[0] = i
        pads[1] = max(0, i - (w - 1) % (2 * st))
        pads[2] = s - i // 2
        constraint = h - 1 - ((h - 1 - st // 2) // st) * st
        bottom = s - (i + 1) // 2 - constraint
        if bottom >= 0:
            pads[3] = bottom
        else:
            slices[1] = bottom
        return slices, pads

    def shape_for_even(i):
        slices, pads = [None] * 4, [0] * 4
        left = i - st
        if left >= 0:
            pads[0] = left
        else:
            slices[2] = -left
        pads[1] = max(0, i - (w - 1 - st) % (2 * st))
        top_shift = -(i % 2) if st % 2 == 1 else 0
        top = s - i // 2 + top_shift - st // 2
        if top >= 0:
            pads[2] = top
        else:
            slices[0] = -top
        bottom_shift = 0 if st % 2 == 1 else -(i % 2)
        pads[3] = max(0, s - i // 2 + bottom_shift - (h - st // 2 - 1) % st)
        return slices, pads

    odd = even = None
    for i in range(s + 1):
        kh, kw = 1 + 2 * s - i, (1 if i == 0 else 2)
        dil = 1 if i == 0 else 2 * i
        for which in ("odd", "even"):
            sl, pd = (shape_for_odd(i) if which == "odd" else shape_for_even(i))
            xi = x[:, :, sl[0]:sl[1], sl[2]:sl[3]]
            xi = jnp.pad(xi, ((0, 0), (0, 0), (pd[2], pd[3]), (pd[0], pd[1])))
            p = pool(xi, kh, kw, dil)
            if which == "odd":
                odd = p if odd is None else jnp.maximum(odd, p)
            else:
                even = p if even is None else jnp.maximum(even, p)
    cat = jnp.concatenate([odd, even], axis=3)
    n_o, n_e = odd.shape[3], even.shape[3]
    if n_o == n_e:
        idx = [i + x_ * n_e for i in range(n_e) for x_ in range(2)]
    else:
        idx = [i + x_ * n_o for i in range(n_e) for x_ in range(2)]
        idx.append(n_e)
    return cat[:, :, :, jnp.array(idx)]


if __name__ == "__main__":
    key = jax.random.PRNGKey(0)
    x = jax.random.normal(key, (2, 4, 16, 16), dtype=jnp.float32)
    x_uneven = jax.random.normal(jax.random.PRNGKey(1), (2, 4, 16, 17),
                                 dtype=jnp.float32)

    cases = [(x, 1, 1), (x, 1, 2), (x, 2, 3), (x_uneven, 1, 1)]
    for xi, size, stride in cases:
        out = jax.block_until_ready(hex_maxpool2d(xi, size=size, stride=stride))
        ref = jax.block_until_ready(_reference_hexpool(xi, size, stride))
        assert out.shape == ref.shape, (out.shape, ref.shape, size, stride)
        assert out.dtype == xi.dtype, (out.dtype, xi.dtype)
        assert jnp.allclose(out, ref, atol=1e-6), \
            f"mismatch for shape={xi.shape}, size={size}, stride={stride}"

    print("KERNEL_OK")
</pallas_src>

<mosaic_0001>
module attributes {stable_mosaic.version = 11 : i64} {
  func.func @_hexpool_kernel(%arg0: i32, %arg1: memref<18x18x128xf32, #tpu.memory_space<vmem>>, %arg2: memref<16x8x128xf32, #tpu.memory_space<vmem>>, %arg3: memref<16x8x128xf32, #tpu.memory_space<vmem>>) attributes {dimension_semantics = [#tpu.dimension_semantics<parallel>], iteration_bounds = array<i64: 1>, scalar_prefetch = 0 : i64, scratch_operands = 0 : i64, tpu.core_type = #tpu.core_type<tc>, window_params = [{transform_indices = @transform_0, window_bounds = array<i64: 18, 18, 128>}, {transform_indices = @transform_1, window_bounds = array<i64: 16, 8, 128>}, {transform_indices = @transform_2, window_bounds = array<i64: 16, 8, 128>}]} {
    %c0 = arith.constant 0 : index
    %c1 = arith.constant 1 : index
    %c0_0 = arith.constant 0 : index
    %0 = tpu.strided_load %arg1[%c0, %c1, %c0_0] {strides = array<i32: 1, 2, 1>} : memref<18x18x128xf32, #tpu.memory_space<vmem>>, vector<16x8x128xf32>
    %c1_1 = arith.constant 1 : index
    %c1_2 = arith.constant 1 : index
    %c0_3 = arith.constant 0 : index
    %1 = tpu.strided_load %arg1[%c1_1, %c1_2, %c0_3] {strides = array<i32: 1, 2, 1>} : memref<18x18x128xf32, #tpu.memory_space<vmem>>, vector<16x8x128xf32>
    %2 = arith.maximumf %0, %1 : vector<16x8x128xf32>
    %c2 = arith.constant 2 : index
    %c1_4 = arith.constant 1 : index
    %c0_5 = arith.constant 0 : index
    %3 = tpu.strided_load %arg1[%c2, %c1_4, %c0_5] {strides = array<i32: 1, 2, 1>} : memref<18x18x128xf32, #tpu.memory_space<vmem>>, vector<16x8x128xf32>
    %4 = arith.maximumf %2, %3 : vector<16x8x128xf32>
    %c0_6 = arith.constant 0 : index
    %c2_7 = arith.constant 2 : index
    %c0_8 = arith.constant 0 : index
    %5 = tpu.strided_load %arg1[%c0_6, %c2_7, %c0_8] {strides = array<i32: 1, 2, 1>} : memref<18x18x128xf32, #tpu.memory_space<vmem>>, vector<16x8x128xf32>
    %c1_9 = arith.constant 1 : index
    %c2_10 = arith.constant 2 : index
    %c0_11 = arith.constant 0 : index
    %6 = tpu.strided_load %arg1[%c1_9, %c2_10, %c0_11] {strides = array<i32: 1, 2, 1>} : memref<18x18x128xf32, #tpu.memory_space<vmem>>, vector<16x8x128xf32>
    %7 = arith.maximumf %5, %6 : vector<16x8x128xf32>
    %c2_12 = arith.constant 2 : index
    %c2_13 = arith.constant 2 : index
    %c0_14 = arith.constant 0 : index
    %8 = tpu.strided_load %arg1[%c2_12, %c2_13, %c0_14] {strides = array<i32: 1, 2, 1>} : memref<18x18x128xf32, #tpu.memory_space<vmem>>, vector<16x8x128xf32>
    %9 = arith.maximumf %7, %8 : vector<16x8x128xf32>
    %c0_15 = arith.constant 0 : index
    %c0_16 = arith.constant 0 : index
    %c0_17 = arith.constant 0 : index
    %10 = vector.load %arg2[%c0_15, %c0_16, %c0_17] : memref<16x8x128xf32, #tpu.memory_space<vmem>>, vector<16x8x128xf32>
    tpu.vector_store %arg2[%c0_15, %c0_16, %c0_17], %4 {strides = array<i32>} : memref<16x8x128xf32, #tpu.memory_space<vmem>>, vector<16x8x128xf32>,
    %c0_18 = arith.constant 0 : index
    %c0_19 = arith.constant 0 : index
    %c0_20 = arith.constant 0 : index
    %11 = vector.load %arg3[%c0_18, %c0_19, %c0_20] : memref<16x8x128xf32, #tpu.memory_space<vmem>>, vector<16x8x128xf32>
    tpu.vector_store %arg3[%c0_18, %c0_19, %c0_20], %9 {strides = array<i32>} : memref<16x8x128xf32, #tpu.memory_space<vmem>>, vector<16x8x128xf32>,
    %c0_21 = arith.constant 0 : index
    %c0_22 = arith.constant 0 : index
    %c0_23 = arith.constant 0 : index
    %12 = tpu.strided_load %arg1[%c0_21, %c0_22, %c0_23] {strides = array<i32: 1, 2, 1>} : memref<18x18x128xf32, #tpu.memory_space<vmem>>, vector<16x8x128xf32>
    %c1_24 = arith.constant 1 : index
    %c0_25 = arith.constant 0 : index
    %c0_26 = arith.constant 0 : index
    %13 = tpu.strided_load %arg1[%c1_24, %c0_25, %c0_26] {strides = array<i32: 1, 2, 1>} : memref<18x18x128xf32, #tpu.memory_space<vmem>>, vector<16x8x128xf32>
    %14 = arith.maximumf %12, %13 : vector<16x8x128xf32>
    %c1_27 = arith.constant 1 : index
    %c1_28 = arith.constant 1 : index
    %c0_29 = arith.constant 0 : index
    %15 = tpu.strided_load %arg1[%c1_27, %c1_28, %c0_29] {strides = array<i32: 1, 2, 1>} : memref<18x18x128xf32, #tpu.memory_space<vmem>>, vector<16x8x128xf32>
    %c2_30 = arith.constant 2 : index
    %c1_31 = arith.constant 1 : index
    %c0_32 = arith.constant 0 : index
    %16 = tpu.strided_load %arg1[%c2_30, %c1_31, %c0_32] {strides = array<i32: 1, 2, 1>} : memref<18x18x128xf32, #tpu.memory_space<vmem>>, vector<16x8x128xf32>
    %17 = arith.maximumf %15, %16 : vector<16x8x128xf32>
    %c0_33 = arith.constant 0 : index
    %c0_34 = arith.constant 0 : index
    %c0_35 = arith.constant 0 : index
    %18 = vector.load %arg2[%c0_33, %c0_34, %c0_35] : memref<16x8x128xf32, #tpu.memory_space<vmem>>, vector<16x8x128xf32>
    %19 = arith.maximumf %18, %14 : vector<16x8x128xf32>
    %c0_36 = arith.constant 0 : index
    %c0_37 = arith.constant 0 : index
    %c0_38 = arith.constant 0 : index
    %20 = vector.load %arg2[%c0_36, %c0_37, %c0_38] : memref<16x8x128xf32, #tpu.memory_space<vmem>>, vector<16x8x128xf32>
    tpu.vector_store %arg2[%c0_36, %c0_37, %c0_38], %19 {strides = array<i32>} : memref<16x8x128xf32, #tpu.memory_space<vmem>>, vector<16x8x128xf32>,
    %c0_39 = arith.constant 0 : index
    %c0_40 = arith.constant 0 : index
    %c0_41 = arith.constant 0 : index
    %21 = vector.load %arg3[%c0_39, %c0_40, %c0_41] : memref<16x8x128xf32, #tpu.memory_space<vmem>>, vector<16x8x128xf32>
    %22 = arith.maximumf %21, %17 : vector<16x8x128xf32>
    %c0_42 = arith.constant 0 : index
    %c0_43 = arith.constant 0 : index
    %c0_44 = arith.constant 0 : index
    %23 = vector.load %arg3[%c0_42, %c0_43, %c0_44] : memref<16x8x128xf32, #tpu.memory_space<vmem>>, vector<16x8x128xf32>
    tpu.vector_store %arg3[%c0_42, %c0_43, %c0_44], %22 {strides = array<i32>} : memref<16x8x128xf32, #tpu.memory_space<vmem>>, vector<16x8x128xf32>,
    %c0_45 = arith.constant 0 : index
    %c2_46 = arith.constant 2 : index
    %c0_47 = arith.constant 0 : index
    %24 = tpu.strided_load %arg1[%c0_45, %c2_46, %c0_47] {strides = array<i32: 1, 2, 1>} : memref<18x18x128xf32, #tpu.memory_space<vmem>>, vector<16x8x128xf32>
    %c1_48 = arith.constant 1 : index
    %c2_49 = arith.constant 2 : index
    %c0_50 = arith.constant 0 : index
    %25 = tpu.strided_load %arg1[%c1_48, %c2_49, %c0_50] {strides = array<i32: 1, 2, 1>} : memref<18x18x128xf32, #tpu.memory_space<vmem>>, vector<16x8x128xf32>
    %26 = arith.maximumf %24, %25 : vector<16x8x128xf32>
    %c1_51 = arith.constant 1 : index
    %c3 = arith.constant 3 : index
    %c0_52 = arith.constant 0 : index
    %27 = tpu.strided_load %arg1[%c1_51, %c3, %c0_52] {strides = array<i32: 1, 2, 1>} : memref<18x18x128xf32, #tpu.memory_space<vmem>>, vector<16x8x128xf32>
    %c2_53 = arith.constant 2 : index
    %c3_54 = arith.constant 3 : index
    %c0_55 = arith.constant 0 : index
    %28 = tpu.strided_load %arg1[%c2_53, %c3_54, %c0_55] {strides = array<i32: 1, 2, 1>} : memref<18x18x128xf32, #tpu.memory_space<vmem>>, vector<16x8x128xf32>
    %29 = arith.maximumf %27, %28 : vector<16x8x128xf32>
    %c0_56 = arith.constant 0 : index
    %c0_57 = arith.constant 0 : index
    %c0_58 = arith.constant 0 : index
    %30 = vector.load %arg2[%c0_56, %c0_57, %c0_58] : memref<16x8x128xf32, #tpu.memory_space<vmem>>, vector<16x8x128xf32>
    %31 = arith.maximumf %30, %26 : vector<16x8x128xf32>
    %c0_59 = arith.constant 0 : index
    %c0_60 = arith.constant 0 : index
    %c0_61 = arith.constant 0 : index
    %32 = vector.load %arg2[%c0_59, %c0_60, %c0_61] : memref<16x8x128xf32, #tpu.memory_space<vmem>>, vector<16x8x128xf32>
    tpu.vector_store %arg2[%c0_59, %c0_60, %c0_61], %31 {strides = array<i32>} : memref<16x8x128xf32, #tpu.memory_space<vmem>>, vector<16x8x128xf32>,
    %c0_62 = arith.constant 0 : index
    %c0_63 = arith.constant 0 : index
    %c0_64 = arith.constant 0 : index
    %33 = vector.load %arg3[%c0_62, %c0_63, %c0_64] : memref<16x8x128xf32, #tpu.memory_space<vmem>>, vector<16x8x128xf32>
    %34 = arith.maximumf %33, %29 : vector<16x8x128xf32>
    %c0_65 = arith.constant 0 : index
    %c0_66 = arith.constant 0 : index
    %c0_67 = arith.constant 0 : index
    %35 = vector.load %arg3[%c0_65, %c0_66, %c0_67] : memref<16x8x128xf32, #tpu.memory_space<vmem>>, vector<16x8x128xf32>
    tpu.vector_store %arg3[%c0_65, %c0_66, %c0_67], %34 {strides = array<i32>} : memref<16x8x128xf32, #tpu.memory_space<vmem>>, vector<16x8x128xf32>,
    return
  }
  func.func @transform_0(%arg0: i32) -> (i32, i32, i32) {
    %c0_i32 = arith.constant 0 : i32
    %c0_i32_0 = arith.constant 0 : i32
    %c0_i32_1 = arith.constant 0 : i32
    return %c0_i32, %c0_i32_0, %arg0 : i32, i32, i32
  }
  func.func @transform_1(%arg0: i32) -> (i32, i32, i32) {
    %c0_i32 = arith.constant 0 : i32
    %c0_i32_0 = arith.constant 0 : i32
    %c0_i32_1 = arith.constant 0 : i32
    return %c0_i32, %c0_i32_0, %arg0 : i32, i32, i32
  }
  func.func @transform_2(%arg0: i32) -> (i32, i32, i32) {
    %c0_i32 = arith.constant 0 : i32
    %c0_i32_0 = arith.constant 0 : i32
    %c0_i32_1 = arith.constant 0 : i32
    return %c0_i32, %c0_i32_0, %arg0 : i32, i32, i32
  }
}

</mosaic_0001>

<llo_original>
// kernel: hex_maxpool2d.1
$region0: #{hex_maxpool2d.1}
  #allocation0 [shape = 'u32[]', space=smem, size = 0x4, offset = 0x4, fixed_abs, tag = 'smem constant byte address 0x4 - core index']
  #allocation1 [shape = 'u32[144,128]{1,0:T(1,128)}', space=vmem, size = 0x12000, scoped, tag = 'internal scratch']
  %s0 = inlined_call_operand.vmem [shape: f32[18,18,128], index: 0, kind: input, shape index: {}]
  %s1 = inlined_call_operand.vmem [shape: f32[16,8,128], index: 1, kind: output, shape index: {0}]
  %s2 = inlined_call_operand.vmem [shape: f32[16,8,128], index: 2, kind: output, shape index: {1}]
  %3 = xla_tuple %s1, %s2
  %s4 = sld [smem:[#allocation0]]
  $region22: #{hex_maxpool2d.1} parent=0
    _
  %s6 = ssub.s32 1, %s4
  %s7 = scalar_select 0, %s6, %s4
  // Predicated region
  $region2: #{hex_maxpool2d.1} parent=0 // pred_check
    _
  $region3: #{hex_maxpool2d.1} parent=0 // pred_check_branch
    %9 = sbr.rel (0) target = $region5
  $region4: #{hex_maxpool2d.1} parent=0 // pred_region
    _
  $region5: #{hex_maxpool2d.1} parent=0 // pred_fallthru
    _
  %s10 = scalar_lea.vmem %s0, 1
  %v11 = vld [vmem:[%s10] ss:$2 sm:$0xff]
  %s12 = scalar_lea.vmem %s0, 25
  %v13 = vld [vmem:[%s12] ss:$2 sm:$0xff]
  %s14 = scalar_lea.vmem %s0, 49
  %v15 = vld [vmem:[%s14] ss:$2 sm:$0xff]
  %s16 = scalar_lea.vmem %s0, 73
  %v17 = vld [vmem:[%s16] ss:$2 sm:$0xff]
  %s18 = scalar_lea.vmem %s0, 97
  %v19 = vld [vmem:[%s18] ss:$2 sm:$0xff]
  %s20 = scalar_lea.vmem %s0, 121
  %v21 = vld [vmem:[%s20] ss:$2 sm:$0xff]
  %s22 = scalar_lea.vmem %s0, 145
  %v23 = vld [vmem:[%s22] ss:$2 sm:$0xff]
  %s24 = scalar_lea.vmem %s0, 169
  %v25 = vld [vmem:[%s24] ss:$2 sm:$0xff]
  %s26 = scalar_lea.vmem %s0, 193
  %v27 = vld [vmem:[%s26] ss:$2 sm:$0xff]
  %s28 = scalar_lea.vmem %s0, 217
  %v29 = vld [vmem:[%s28] ss:$2 sm:$0xff]
  %s30 = scalar_lea.vmem %s0, 241
  %v31 = vld [vmem:[%s30] ss:$2 sm:$0xff]
  %s32 = scalar_lea.vmem %s0, 265
  %v33 = vld [vmem:[%s32] ss:$2 sm:$0xff]
  %s34 = scalar_lea.vmem %s0, 289
  %v35 = vld [vmem:[%s34] ss:$2 sm:$0xff]
  %s36 = scalar_lea.vmem %s0, 313
  %v37 = vld [vmem:[%s36] ss:$2 sm:$0xff]
  %s38 = scalar_lea.vmem %s0, 337
  %v39 = vld [vmem:[%s38] ss:$2 sm:$0xff]
  %s40 = scalar_lea.vmem %s0, 361
  %v41 = vld [vmem:[%s40] ss:$2 sm:$0xff]
  %s42 = scalar_lea.vmem %s0, 24
  %s43 = scalar_lea.vmem %s42, 1
  %v44 = vld [vmem:[%s43] ss:$2 sm:$0xff]
  %s45 = scalar_lea.vmem %s42, 25
  %v46 = vld [vmem:[%s45] ss:$2 sm:$0xff]
  %s47 = scalar_lea.vmem %s42, 49
  %v48 = vld [vmem:[%s47] ss:$2 sm:$0xff]
  %s49 = scalar_lea.vmem %s42, 73
  %v50 = vld [vmem:[%s49] ss:$2 sm:$0xff]
  %s51 = scalar_lea.vmem %s42, 97
  %v52 = vld [vmem:[%s51] ss:$2 sm:$0xff]
  %s53 = scalar_lea.vmem %s42, 121
  %v54 = vld [vmem:[%s53] ss:$2 sm:$0xff]
  %s55 = scalar_lea.vmem %s42, 145
  %v56 = vld [vmem:[%s55] ss:$2 sm:$0xff]
  %s57 = scalar_lea.vmem %s42, 169
  %v58 = vld [vmem:[%s57] ss:$2 sm:$0xff]
  %s59 = scalar_lea.vmem %s42, 193
  %v60 = vld [vmem:[%s59] ss:$2 sm:$0xff]
  %s61 = scalar_lea.vmem %s42, 217
  %v62 = vld [vmem:[%s61] ss:$2 sm:$0xff]
  %s63 = scalar_lea.vmem %s42, 241
  %v64 = vld [vmem:[%s63] ss:$2 sm:$0xff]
  %s65 = scalar_lea.vmem %s42, 265
  %v66 = vld [vmem:[%s65] ss:$2 sm:$0xff]
  %s67 = scalar_lea.vmem %s42, 289
  %v68 = vld [vmem:[%s67] ss:$2 sm:$0xff]
  %s69 = scalar_lea.vmem %s42, 313
  %v70 = vld [vmem:[%s69] ss:$2 sm:$0xff]
  %s71 = scalar_lea.vmem %s42, 337
  %v72 = vld [vmem:[%s71] ss:$2 sm:$0xff]
  %s73 = scalar_lea.vmem %s42, 361
  %v74 = vld [vmem:[%s73] ss:$2 sm:$0xff]
  %v75 = vmax.f32 %v11, %v44
  %v76 = vmax.f32 %v13, %v46
  %v77 = vmax.f32 %v15, %v48
  %v78 = vmax.f32 %v17, %v50
  %v79 = vmax.f32 %v19, %v52
  %v80 = vmax.f32 %v21, %v54
  %v81 = vmax.f32 %v23, %v56
  %v82 = vmax.f32 %v25, %v58
  %v83 = vmax.f32 %v27, %v60
  %v84 = vmax.f32 %v29, %v62
  %v85 = vmax.f32 %v31, %v64
  %v86 = vmax.f32 %v33, %v66
  %v87 = vmax.f32 %v35, %v68
  %v88 = vmax.f32 %v37, %v70
  %v89 = vmax.f32 %v39, %v72
  %v90 = vmax.f32 %v41, %v74
  %s91 = scalar_lea.vmem %s0, 48
  %s92 = scalar_lea.vmem %s91, 1
  %v93 = vld [vmem:[%s92] ss:$2 sm:$0xff]
  %s94 = scalar_lea.vmem %s91, 25
  %v95 = vld [vmem:[%s94] ss:$2 sm:$0xff]
  %s96 = scalar_lea.vmem %s91, 49
  %v97 = vld [vmem:[%s96] ss:$2 sm:$0xff]
  %s98 = scalar_lea.vmem %s91, 73
  %v99 = vld [vmem:[%s98] ss:$2 sm:$0xff]
  %s100 = scalar_lea.vmem %s91, 97
  %v101 = vld [vmem:[%s100] ss:$2 sm:$0xff]
  %s102 = scalar_lea.vmem %s91, 121
  %v103 = vld [vmem:[%s102] ss:$2 sm:$0xff]
  %s104 = scalar_lea.vmem %s91, 145
  %v105 = vld [vmem:[%s104] ss:$2 sm:$0xff]
  %s106 = scalar_lea.vmem %s91, 169
  %v107 = vld [vmem:[%s106] ss:$2 sm:$0xff]
  %s108 = scalar_lea.vmem %s91, 193
  %v109 = vld [vmem:[%s108] ss:$2 sm:$0xff]
  %s110 = scalar_lea.vmem %s91, 217
  %v111 = vld [vmem:[%s110] ss:$2 sm:$0xff]
  %s112 = scalar_lea.vmem %s91, 241
  %v113 = vld [vmem:[%s112] ss:$2 sm:$0xff]
  %s114 = scalar_lea.vmem %s91, 265
  %v115 = vld [vmem:[%s114] ss:$2 sm:$0xff]
  %s116 = scalar_lea.vmem %s91, 289
  %v117 = vld [vmem:[%s116] ss:$2 sm:$0xff]
  %s118 = scalar_lea.vmem %s91, 313
  %v119 = vld [vmem:[%s118] ss:$2 sm:$0xff]
  %s120 = scalar_lea.vmem %s91, 337
  %v121 = vld [vmem:[%s120] ss:$2 sm:$0xff]
  %s122 = scalar_lea.vmem %s91, 361
  %v123 = vld [vmem:[%s122] ss:$2 sm:$0xff]
  %v124 = vmax.f32 %v75, %v93
  %v125 = vmax.f32 %v76, %v95
  %v126 = vmax.f32 %v77, %v97
  %v127 = vmax.f32 %v78, %v99
  %v128 = vmax.f32 %v79, %v101
  %v129 = vmax.f32 %v80, %v103
  %v130 = vmax.f32 %v81, %v105
  %v131 = vmax.f32 %v82, %v107
  %v132 = vmax.f32 %v83, %v109
  %v133 = vmax.f32 %v84, %v111
  %v134 = vmax.f32 %v85, %v113
  %v135 = vmax.f32 %v86, %v115
  %v136 = vmax.f32 %v87, %v117
  %v137 = vmax.f32 %v88, %v119
  %v138 = vmax.f32 %v89, %v121
  %v139 = vmax.f32 %v90, %v123
  %s140 = scalar_lea.vmem %s0, 2
  %v141 = vld [vmem:[%s140] ss:$2 sm:$0xff]
  %s142 = scalar_lea.vmem %s0, 26
  %v143 = vld [vmem:[%s142] ss:$2 sm:$0xff]
  %s144 = scalar_lea.vmem %s0, 50
  %v145 = vld [vmem:[%s144] ss:$2 sm:$0xff]
  %s146 = scalar_lea.vmem %s0, 74
  %v147 = vld [vmem:[%s146] ss:$2 sm:$0xff]
  %s148 = scalar_lea.vmem %s0, 98
  %v149 = vld [vmem:[%s148] ss:$2 sm:$0xff]
  %s150 = scalar_lea.vmem %s0, 122
  %v151 = vld [vmem:[%s150] ss:$2 sm:$0xff]
  %s152 = scalar_lea.vmem %s0, 146
  %v153 = vld [vmem:[%s152] ss:$2 sm:$0xff]
  %s154 = scalar_lea.vmem %s0, 170
  %v155 = vld [vmem:[%s154] ss:$2 sm:$0xff]
  %s156 = scalar_lea.vmem %s0, 194
  %v157 = vld [vmem:[%s156] ss:$2 sm:$0xff]
  %s158 = scalar_lea.vmem %s0, 218
  %v159 = vld [vmem:[%s158] ss:$2 sm:$0xff]
  %s160 = scalar_lea.vmem %s0, 242
  %v161 = vld [vmem:[%s160] ss:$2 sm:$0xff]
  %s162 = scalar_lea.vmem %s0, 266
  %v163 = vld [vmem:[%s162] ss:$2 sm:$0xff]
  %s164 = scalar_lea.vmem %s0, 290
  %v165 = vld [vmem:[%s164] ss:$2 sm:$0xff]
  %s166 = scalar_lea.vmem %s0, 314
  %v167 = vld [vmem:[%s166] ss:$2 sm:$0xff]
  %s168 = scalar_lea.vmem %s0, 338
  %v169 = vld [vmem:[%s168] ss:$2 sm:$0xff]
  %s170 = scalar_lea.vmem %s0, 362
  %v171 = vld [vmem:[%s170] ss:$2 sm:$0xff]
  %s172 = scalar_lea.vmem %s42, 2
  %v173 = vld [vmem:[%s172] ss:$2 sm:$0xff]
  %s174 = scalar_lea.vmem %s42, 26
  %v175 = vld [vmem:[%s174] ss:$2 sm:$0xff]
  %s176 = scalar_lea.vmem %s42, 50
  %v177 = vld [vmem:[%s176] ss:$2 sm:$0xff]
  %s178 = scalar_lea.vmem %s42, 74
  %v179 = vld [vmem:[%s178] ss:$2 sm:$0xff]
  %s180 = scalar_lea.vmem %s42, 98
  %v181 = vld [vmem:[%s180] ss:$2 sm:$0xff]
  %s182 = scalar_lea.vmem %s42, 122
  %v183 = vld [vmem:[%s182] ss:$2 sm:$0xff]
  %s184 = scalar_lea.vmem %s42, 146
  %v185 = vld [vmem:[%s184] ss:$2 sm:$0xff]
  %s186 = scalar_lea.vmem %s42, 170
  %v187 = vld [vmem:[%s186] ss:$2 sm:$0xff]
  %s188 = scalar_lea.vmem %s42, 194
  %v189 = vld [vmem:[%s188] ss:$2 sm:$0xff]
  %s190 = scalar_lea.vmem %s42, 218
  %v191 = vld [vmem:[%s190] ss:$2 sm:$0xff]
  %s192 = scalar_lea.vmem %s42, 242
  %v193 = vld [vmem:[%s192] ss:$2 sm:$0xff]
  %s194 = scalar_lea.vmem %s42, 266
  %v195 = vld [vmem:[%s194] ss:$2 sm:$0xff]
  %s196 = scalar_lea.vmem %s42, 290
  %v197 = vld [vmem:[%s196] ss:$2 sm:$0xff]
  %s198 = scalar_lea.vmem %s42, 314
  %v199 = vld [vmem:[%s198] ss:$2 sm:$0xff]
  %s200 = scalar_lea.vmem %s42, 338
  %v201 = vld [vmem:[%s200] ss:$2 sm:$0xff]
  %s202 = scalar_lea.vmem %s42, 362
  %v203 = vld [vmem:[%s202] ss:$2 sm:$0xff]
  %v204 = vmax.f32 %v141, %v173
  %v205 = vmax.f32 %v143, %v175
  %v206 = vmax.f32 %v145, %v177
  %v207 = vmax.f32 %v147, %v179
  %v208 = vmax.f32 %v149, %v181
  %v209 = vmax.f32 %v151, %v183
  %v210 = vmax.f32 %v153, %v185
  %v211 = vmax.f32 %v155, %v187
  %v212 = vmax.f32 %v157, %v189
  %v213 = vmax.f32 %v159, %v191
  %v214 = vmax.f32 %v161, %v193
  %v215 = vmax.f32 %v163, %v195
  %v216 = vmax.f32 %v165, %v197
  %v217 = vmax.f32 %v167, %v199
  %v218 = vmax.f32 %v169, %v201
  %v219 = vmax.f32 %v171, %v203
  %s220 = scalar_lea.vmem %s91, 2
  %v221 = vld [vmem:[%s220] ss:$2 sm:$0xff]
  %s222 = scalar_lea.vmem %s91, 26
  %v223 = vld [vmem:[%s222] ss:$2 sm:$0xff]
  %s224 = scalar_lea.vmem %s91, 50
  %v225 = vld [vmem:[%s224] ss:$2 sm:$0xff]
  %s226 = scalar_lea.vmem %s91, 74
  %v227 = vld [vmem:[%s226] ss:$2 sm:$0xff]
  %s228 = scalar_lea.vmem %s91, 98
  %v229 = vld [vmem:[%s228] ss:$2 sm:$0xff]
  %s230 = scalar_lea.vmem %s91, 122
  %v231 = vld [vmem:[%s230] ss:$2 sm:$0xff]
  %s232 = scalar_lea.vmem %s91, 146
  %v233 = vld [vmem:[%s232] ss:$2 sm:$0xff]
  %s234 = scalar_lea.vmem %s91, 170
  %v235 = vld [vmem:[%s234] ss:$2 sm:$0xff]
  %s236 = scalar_lea.vmem %s91, 194
  %v237 = vld [vmem:[%s236] ss:$2 sm:$0xff]
  %s238 = scalar_lea.vmem %s91, 218
  %v239 = vld [vmem:[%s238] ss:$2 sm:$0xff]
  %s240 = scalar_lea.vmem %s91, 242
  %v241 = vld [vmem:[%s240] ss:$2 sm:$0xff]
  %s242 = scalar_lea.vmem %s91, 266
  %v243 = vld [vmem:[%s242] ss:$2 sm:$0xff]
  %s244 = scalar_lea.vmem %s91, 290
  %v245 = vld [vmem:[%s244] ss:$2 sm:$0xff]
  %s246 = scalar_lea.vmem %s91, 314
  %v247 = vld [vmem:[%s246] ss:$2 sm:$0xff]
  %s248 = scalar_lea.vmem %s91, 338
  %v249 = vld [vmem:[%s248] ss:$2 sm:$0xff]
  %s250 = scalar_lea.vmem %s91, 362
  %v251 = vld [vmem:[%s250] ss:$2 sm:$0xff]
  %v252 = vmax.f32 %v204, %v221
  %v253 = vmax.f32 %v205, %v223
  %v254 = vmax.f32 %v206, %v225
  %v255 = vmax.f32 %v207, %v227
  %v256 = vmax.f32 %v208, %v229
  %v257 = vmax.f32 %v209, %v231
  %v258 = vmax.f32 %v210, %v233
  %v259 = vmax.f32 %v211, %v235
  %v260 = vmax.f32 %v212, %v237
  %v261 = vmax.f32 %v213, %v239
  %v262 = vmax.f32 %v214, %v241
  %v263 = vmax.f32 %v215, %v243
  %v264 = vmax.f32 %v216, %v245
  %v265 = vmax.f32 %v217, %v247
  %v266 = vmax.f32 %v218, %v249
  %v267 = vmax.f32 %v219, %v251
  %268 = vst [vmem:[%s1] sm:$0xff] %v124
  %269 = vst [vmem:[%s1 + $0x8] sm:$0xff] %v125
  %270 = vst [vmem:[%s1 + $0x10] sm:$0xff] %v126
  %271 = vst [vmem:[%s1 + $0x18] sm:$0xff] %v127
  %272 = vst [vmem:[%s1 + $0x20] sm:$0xff] %v128
  %273 = vst [vmem:[%s1 + $0x28] sm:$0xff] %v129
  %274 = vst [vmem:[%s1 + $0x30] sm:$0xff] %v130
  %275 = vst [vmem:[%s1 + $0x38] sm:$0xff] %v131
  %276 = vst [vmem:[%s1 + $0x40] sm:$0xff] %v132
  %277 = vst [vmem:[%s1 + $0x48] sm:$0xff] %v133
  %278 = vst [vmem:[%s1 + $0x50] sm:$0xff] %v134
  %279 = vst [vmem:[%s1 + $0x58] sm:$0xff] %v135
  %280 = vst [vmem:[%s1 + $0x60] sm:$0xff] %v136
  %281 = vst [vmem:[%s1 + $0x68] sm:$0xff] %v137
  %282 = vst [vmem:[%s1 + $0x70] sm:$0xff] %v138
  %283 = vst [vmem:[%s1 + $0x78] sm:$0xff] %v139
  %284 = vst [vmem:[%s2] sm:$0xff] %v252
  %285 = vst [vmem:[%s2 + $0x8] sm:$0xff] %v253
  %286 = vst [vmem:[%s2 + $0x10] sm:$0xff] %v254
  %287 = vst [vmem:[%s2 + $0x18] sm:$0xff] %v255
  %288 = vst [vmem:[%s2 + $0x20] sm:$0xff] %v256
  %289 = vst [vmem:[%s2 + $0x28] sm:$0xff] %v257
  %290 = vst [vmem:[%s2 + $0x30] sm:$0xff] %v258
  %291 = vst [vmem:[%s2 + $0x38] sm:$0xff] %v259
  %292 = vst [vmem:[%s2 + $0x40] sm:$0xff] %v260
  %293 = vst [vmem:[%s2 + $0x48] sm:$0xff] %v261
  %294 = vst [vmem:[%s2 + $0x50] sm:$0xff] %v262
  %295 = vst [vmem:[%s2 + $0x58] sm:$0xff] %v263
  %296 = vst [vmem:[%s2 + $0x60] sm:$0xff] %v264
  %297 = vst [vmem:[%s2 + $0x68] sm:$0xff] %v265
  %298 = vst [vmem:[%s2 + $0x70] sm:$0xff] %v266
  %299 = vst [vmem:[%s2 + $0x78] sm:$0xff] %v267
  %v300 = vld [vmem:[%s0] ss:$2 sm:$0xff]
  %s301 = scalar_lea.vmem %s0, 24
  %v302 = vld [vmem:[%s301] ss:$2 sm:$0xff]
  %s303 = scalar_lea.vmem %s0, 48
  %v304 = vld [vmem:[%s303] ss:$2 sm:$0xff]
  %s305 = scalar_lea.vmem %s0, 72
  %v306 = vld [vmem:[%s305] ss:$2 sm:$0xff]
  %s307 = scalar_lea.vmem %s0, 96
  %v308 = vld [vmem:[%s307] ss:$2 sm:$0xff]
  %s309 = scalar_lea.vmem %s0, 120
  %v310 = vld [vmem:[%s309] ss:$2 sm:$0xff]
  %s311 = scalar_lea.vmem %s0, 144
  %v312 = vld [vmem:[%s311] ss:$2 sm:$0xff]
  %s313 = scalar_lea.vmem %s0, 168
  %v314 = vld [vmem:[%s313] ss:$2 sm:$0xff]
  %s315 = scalar_lea.vmem %s0, 192
  %v316 = vld [vmem:[%s315] ss:$2 sm:$0xff]
  %s317 = scalar_lea.vmem %s0, 216
  %v318 = vld [vmem:[%s317] ss:$2 sm:$0xff]
  %s319 = scalar_lea.vmem %s0, 240
  %v320 = vld [vmem:[%s319] ss:$2 sm:$0xff]
  %s321 = scalar_lea.vmem %s0, 264
  %v322 = vld [vmem:[%s321] ss:$2 sm:$0xff]
  %s323 = scalar_lea.vmem %s0, 288
  %v324 = vld [vmem:[%s323] ss:$2 sm:$0xff]
  %s325 = scalar_lea.vmem %s0, 312
  %v326 = vld [vmem:[%s325] ss:$2 sm:$0xff]
  %s327 = scalar_lea.vmem %s0, 336
  %v328 = vld [vmem:[%s327] ss:$2 sm:$0xff]
  %s329 = scalar_lea.vmem %s0, 360
  %v330 = vld [vmem:[%s329] ss:$2 sm:$0xff]
  %v331 = vld [vmem:[%s42] ss:$2 sm:$0xff]
  %s332 = scalar_lea.vmem %s42, 24
  %v333 = vld [vmem:[%s332] ss:$2 sm:$0xff]
  %s334 = scalar_lea.vmem %s42, 48
  %v335 = vld [vmem:[%s334] ss:$2 sm:$0xff]
  %s336 = scalar_lea.vmem %s42, 72
  %v337 = vld [vmem:[%s336] ss:$2 sm:$0xff]
  %s338 = scalar_lea.vmem %s42, 96
  %v339 = vld [vmem:[%s338] ss:$2 sm:$0xff]
  %s340 = scalar_lea.vmem %s42, 120
  %v341 = vld [vmem:[%s340] ss:$2 sm:$0xff]
  %s342 = scalar_lea.vmem %s42, 144
  %v343 = vld [vmem:[%s342] ss:$2 sm:$0xff]
  %s344 = scalar_lea.vmem %s42, 168
  %v345 = vld [vmem:[%s344] ss:$2 sm:$0xff]
  %s346 = scalar_lea.vmem %s42, 192
  %v347 = vld [vmem:[%s346] ss:$2 sm:$0xff]
  %s348 = scalar_lea.vmem %s42, 216
  %v349 = vld [vmem:[%s348] ss:$2 sm:$0xff]
  %s350 = scalar_lea.vmem %s42, 240
  %v351 = vld [vmem:[%s350] ss:$2 sm:$0xff]
  %s352 = scalar_lea.vmem %s42, 264
  %v353 = vld [vmem:[%s352] ss:$2 sm:$0xff]
  %s354 = scalar_lea.vmem %s42, 288
  %v355 = vld [vmem:[%s354] ss:$2 sm:$0xff]
  %s356 = scalar_lea.vmem %s42, 312
  %v357 = vld [vmem:[%s356] ss:$2 sm:$0xff]
  %s358 = scalar_lea.vmem %s42, 336
  %v359 = vld [vmem:[%s358] ss:$2 sm:$0xff]
  %s360 = scalar_lea.vmem %s42, 360
  %v361 = vld [vmem:[%s360] ss:$2 sm:$0xff]
  %v362 = vmax.f32 %v300, %v331
  %v363 = vmax.f32 %v302, %v333
  %v364 = vmax.f32 %v304, %v335
  %v365 = vmax.f32 %v306, %v337
  %v366 = vmax.f32 %v308, %v339
  %v367 = vmax.f32 %v310, %v341
  %v368 = vmax.f32 %v312, %v343
  %v369 = vmax.f32 %v314, %v345
  %v370 = vmax.f32 %v316, %v347
  %v371 = vmax.f32 %v318, %v349
  %v372 = vmax.f32 %v320, %v351
  %v373 = vmax.f32 %v322, %v353
  %v374 = vmax.f32 %v324, %v355
  %v375 = vmax.f32 %v326, %v357
  %v376 = vmax.f32 %v328, %v359
  %v377 = vmax.f32 %v330, %v361
  %v378 = vld [vmem:[%s43] ss:$2 sm:$0xff]
  %v379 = vld [vmem:[%s45] ss:$2 sm:$0xff]
  %v380 = vld [vmem:[%s47] ss:$2 sm:$0xff]
  %v381 = vld [vmem:[%s49] ss:$2 sm:$0xff]
  %v382 = vld [vmem:[%s51] ss:$2 sm:$0xff]
  %v383 = vld [vmem:[%s53] ss:$2 sm:$0xff]
  %v384 = vld [vmem:[%s55] ss:$2 sm:$0xff]
  %v385 = vld [vmem:[%s57] ss:$2 sm:$0xff]
  %v386 = vld [vmem:[%s59] ss:$2 sm:$0xff]
  %v387 = vld [vmem:[%s61] ss:$2 sm:$0xff]
  %v388 = vld [vmem:[%s63] ss:$2 sm:$0xff]
  %v389 = vld [vmem:[%s65] ss:$2 sm:$0xff]
  %v390 = vld [vmem:[%s67] ss:$2 sm:$0xff]
  %v391 = vld [vmem:[%s69] ss:$2 sm:$0xff]
  %v392 = vld [vmem:[%s71] ss:$2 sm:$0xff]
  %v393 = vld [vmem:[%s73] ss:$2 sm:$0xff]
  %v394 = vld [vmem:[%s92] ss:$2 sm:$0xff]
  %v395 = vld [vmem:[%s94] ss:$2 sm:$0xff]
  %v396 = vld [vmem:[%s96] ss:$2 sm:$0xff]
  %v397 = vld [vmem:[%s98] ss:$2 sm:$0xff]
  %v398 = vld [vmem:[%s100] ss:$2 sm:$0xff]
  %v399 = vld [vmem:[%s102] ss:$2 sm:$0xff]
  %v400 = vld [vmem:[%s104] ss:$2 sm:$0xff]
  %v401 = vld [vmem:[%s106] ss:$2 sm:$0xff]
  %v402 = vld [vmem:[%s108] ss:$2 sm:$0xff]
  %v403 = vld [vmem:[%s110] ss:$2 sm:$0xff]
  %v404 = vld [vmem:[%s112] ss:$2 sm:$0xff]
  %v405 = vld [vmem:[%s114] ss:$2 sm:$0xff]
  %v406 = vld [vmem:[%s116] ss:$2 sm:$0xff]
  %v407 = vld [vmem:[%s118] ss:$2 sm:$0xff]
  %v408 = vld [vmem:[%s120] ss:$2 sm:$0xff]
  %v409 = vld [vmem:[%s122] ss:$2 sm:$0xff]
  %v410 = vmax.f32 %v378, %v394
  %v411 = vmax.f32 %v379, %v395
  %v412 = vmax.f32 %v380, %v396
  %v413 = vmax.f32 %v381, %v397
  %v414 = vmax.f32 %v382, %v398
  %v415 = vmax.f32 %v383, %v399
  %v416 = vmax.f32 %v384, %v400
  %v417 = vmax.f32 %v385, %v401
  %v418 = vmax.f32 %v386, %v402
  %v419 = vmax.f32 %v387, %v403
  %v420 = vmax.f32 %v388, %v404
  %v421 = vmax.f32 %v389, %v405
  %v422 = vmax.f32 %v390, %v406
  %v423 = vmax.f32 %v391, %v407
  %v424 = vmax.f32 %v392, %v408
  %v425 = vmax.f32 %v393, %v409
  %v426 = vld [vmem:[%s1] sm:$0xff]
  %v427 = vld [vmem:[%s1 + $0x8] sm:$0xff]
  %v428 = vld [vmem:[%s1 + $0x10] sm:$0xff]
  %v429 = vld [vmem:[%s1 + $0x18] sm:$0xff]
  %v430 = vld [vmem:[%s1 + $0x20] sm:$0xff]
  %v431 = vld [vmem:[%s1 + $0x28] sm:$0xff]
  %v432 = vld [vmem:[%s1 + $0x30] sm:$0xff]
  %v433 = vld [vmem:[%s1 + $0x38] sm:$0xff]
  %v434 = vld [vmem:[%s1 + $0x40] sm:$0xff]
  %v435 = vld [vmem:[%s1 + $0x48] sm:$0xff]
  %v436 = vld [vmem:[%s1 + $0x50] sm:$0xff]
  %v437 = vld [vmem:[%s1 + $0x58] sm:$0xff]
  %v438 = vld [vmem:[%s1 + $0x60] sm:$0xff]
  %v439 = vld [vmem:[%s1 + $0x68] sm:$0xff]
  %v440 = vld [vmem:[%s1 + $0x70] sm:$0xff]
  %v441 = vld [vmem:[%s1 + $0x78] sm:$0xff]
  %v442 = vmax.f32 %v426, %v362
  %v443 = vmax.f32 %v427, %v363
  %v444 = vmax.f32 %v428, %v364
  %v445 = vmax.f32 %v429, %v365
  %v446 = vmax.f32 %v430, %v366
  %v447 = vmax.f32 %v431, %v367
  %v448 = vmax.f32 %v432, %v368
  %v449 = vmax.f32 %v433, %v369
  %v450 = vmax.f32 %v434, %v370
  %v451 = vmax.f32 %v435, %v371
  %v452 = vmax.f32 %v436, %v372
  %v453 = vmax.f32 %v437, %v373
  %v454 = vmax.f32 %v438, %v374
  %v455 = vmax.f32 %v439, %v375
  %v456 = vmax.f32 %v440, %v376
  %v457 = vmax.f32 %v441, %v377
  %458 = vst [vmem:[%s1] sm:$0xff] %v442
  %459 = vst [vmem:[%s1 + $0x8] sm:$0xff] %v443
  %460 = vst [vmem:[%s1 + $0x10] sm:$0xff] %v444
  %461 = vst [vmem:[%s1 + $0x18] sm:$0xff] %v445
  %462 = vst [vmem:[%s1 + $0x20] sm:$0xff] %v446
  %463 = vst [vmem:[%s1 + $0x28] sm:$0xff] %v447
  %464 = vst [vmem:[%s1 + $0x30] sm:$0xff] %v448
  %465 = vst [vmem:[%s1 + $0x38] sm:$0xff] %v449
  %466 = vst [vmem:[%s1 + $0x40] sm:$0xff] %v450
  %467 = vst [vmem:[%s1 + $0x48] sm:$0xff] %v451
  %468 = vst [vmem:[%s1 + $0x50] sm:$0xff] %v452
  %469 = vst [vmem:[%s1 + $0x58] sm:$0xff] %v453
  %470 = vst [vmem:[%s1 + $0x60] sm:$0xff] %v454
  %471 = vst [vmem:[%s1 + $0x68] sm:$0xff] %v455
  %472 = vst [vmem:[%s1 + $0x70] sm:$0xff] %v456
  %473 = vst [vmem:[%s1 + $0x78] sm:$0xff] %v457
  %v474 = vld [vmem:[%s2] sm:$0xff]
  %v475 = vld [vmem:[%s2 + $0x8] sm:$0xff]
  %v476 = vld [vmem:[%s2 + $0x10] sm:$0xff]
  %v477 = vld [vmem:[%s2 + $0x18] sm:$0xff]
  %v478 = vld [vmem:[%s2 + $0x20] sm:$0xff]
  %v479 = vld [vmem:[%s2 + $0x28] sm:$0xff]
  %v480 = vld [vmem:[%s2 + $0x30] sm:$0xff]
  %v481 = vld [vmem:[%s2 + $0x38] sm:$0xff]
  %v482 = vld [vmem:[%s2 + $0x40] sm:$0xff]
  %v483 = vld [vmem:[%s2 + $0x48] sm:$0xff]
  %v484 = vld [vmem:[%s2 + $0x50] sm:$0xff]
  %v485 = vld [vmem:[%s2 + $0x58] sm:$0xff]
  %v486 = vld [vmem:[%s2 + $0x60] sm:$0xff]
  %v487 = vld [vmem:[%s2 + $0x68] sm:$0xff]
  %v488 = vld [vmem:[%s2 + $0x70] sm:$0xff]
  %v489 = vld [vmem:[%s2 + $0x78] sm:$0xff]
  %v490 = vmax.f32 %v474, %v410
  %v491 = vmax.f32 %v475, %v411
  %v492 = vmax.f32 %v476, %v412
  %v493 = vmax.f32 %v477, %v413
  %v494 = vmax.f32 %v478, %v414
  %v495 = vmax.f32 %v479, %v415
  %v496 = vmax.f32 %v480, %v416
  %v497 = vmax.f32 %v481, %v417
  %v498 = vmax.f32 %v482, %v418
  %v499 = vmax.f32 %v483, %v419
  %v500 = vmax.f32 %v484, %v420
  %v501 = vmax.f32 %v485, %v421
  %v502 = vmax.f32 %v486, %v422
  %v503 = vmax.f32 %v487, %v423
  %v504 = vmax.f32 %v488, %v424
  %v505 = vmax.f32 %v489, %v425
  %506 = vst [vmem:[%s2] sm:$0xff] %v490
  %507 = vst [vmem:[%s2 + $0x8] sm:$0xff] %v491
  %508 = vst [vmem:[%s2 + $0x10] sm:$0xff] %v492
  %509 = vst [vmem:[%s2 + $0x18] sm:$0xff] %v493
  %510 = vst [vmem:[%s2 + $0x20] sm:$0xff] %v494
  %511 = vst [vmem:[%s2 + $0x28] sm:$0xff] %v495
  %512 = vst [vmem:[%s2 + $0x30] sm:$0xff] %v496
  %513 = vst [vmem:[%s2 + $0x38] sm:$0xff] %v497
  %514 = vst [vmem:[%s2 + $0x40] sm:$0xff] %v498
  %515 = vst [vmem:[%s2 + $0x48] sm:$0xff] %v499
  %516 = vst [vmem:[%s2 + $0x50] sm:$0xff] %v500
  %517 = vst [vmem:[%s2 + $0x58] sm:$0xff] %v501
  %518 = vst [vmem:[%s2 + $0x60] sm:$0xff] %v502
  %519 = vst [vmem:[%s2 + $0x68] sm:$0xff] %v503
  %520 = vst [vmem:[%s2 + $0x70] sm:$0xff] %v504
  %521 = vst [vmem:[%s2 + $0x78] sm:$0xff] %v505
  %v522 = vld [vmem:[%s140] ss:$2 sm:$0xff]
  %v523 = vld [vmem:[%s142] ss:$2 sm:$0xff]
  %v524 = vld [vmem:[%s144] ss:$2 sm:$0xff]
  %v525 = vld [vmem:[%s146] ss:$2 sm:$0xff]
  %v526 = vld [vmem:[%s148] ss:$2 sm:$0xff]
  %v527 = vld [vmem:[%s150] ss:$2 sm:$0xff]
  %v528 = vld [vmem:[%s152] ss:$2 sm:$0xff]
  %v529 = vld [vmem:[%s154] ss:$2 sm:$0xff]
  %v530 = vld [vmem:[%s156] ss:$2 sm:$0xff]
  %v531 = vld [vmem:[%s158] ss:$2 sm:$0xff]
  %v532 = vld [vmem:[%s160] ss:$2 sm:$0xff]
  %v533 = vld [vmem:[%s162] ss:$2 sm:$0xff]
  %v534 = vld [vmem:[%s164] ss:$2 sm:$0xff]
  %v535 = vld [vmem:[%s166] ss:$2 sm:$0xff]
  %v536 = vld [vmem:[%s168] ss:$2 sm:$0xff]
  %v537 = vld [vmem:[%s170] ss:$2 sm:$0xff]
  %v538 = vld [vmem:[%s172] ss:$2 sm:$0xff]
  %v539 = vld [vmem:[%s174] ss:$2 sm:$0xff]
  %v540 = vld [vmem:[%s176] ss:$2 sm:$0xff]
  %v541 = vld [vmem:[%s178] ss:$2 sm:$0xff]
  %v542 = vld [vmem:[%s180] ss:$2 sm:$0xff]
  %v543 = vld [vmem:[%s182] ss:$2 sm:$0xff]
  %v544 = vld [vmem:[%s184] ss:$2 sm:$0xff]
  %v545 = vld [vmem:[%s186] ss:$2 sm:$0xff]
  %v546 = vld [vmem:[%s188] ss:$2 sm:$0xff]
  %v547 = vld [vmem:[%s190] ss:$2 sm:$0xff]
  %v548 = vld [vmem:[%s192] ss:$2 sm:$0xff]
  %v549 = vld [vmem:[%s194] ss:$2 sm:$0xff]
  %v550 = vld [vmem:[%s196] ss:$2 sm:$0xff]
  %v551 = vld [vmem:[%s198] ss:$2 sm:$0xff]
  %v552 = vld [vmem:[%s200] ss:$2 sm:$0xff]
  %v553 = vld [vmem:[%s202] ss:$2 sm:$0xff]
  %v554 = vmax.f32 %v522, %v538
  %v555 = vmax.f32 %v523, %v539
  %v556 = vmax.f32 %v524, %v540
  %v557 = vmax.f32 %v525, %v541
  %v558 = vmax.f32 %v526, %v542
  %v559 = vmax.f32 %v527, %v543
  %v560 = vmax.f32 %v528, %v544
  %v561 = vmax.f32 %v529, %v545
  %v562 = vmax.f32 %v530, %v546
  %v563 = vmax.f32 %v531, %v547
  %v564 = vmax.f32 %v532, %v548
  %v565 = vmax.f32 %v533, %v549
  %v566 = vmax.f32 %v534, %v550
  %v567 = vmax.f32 %v535, %v551
  %v568 = vmax.f32 %v536, %v552
  %v569 = vmax.f32 %v537, %v553
  %s570 = scalar_lea.vmem %s42, 3
  %v571 = vld [vmem:[%s570] ss:$2 sm:$0xff]
  %s572 = scalar_lea.vmem %s42, 27
  %v573 = vld [vmem:[%s572] ss:$2 sm:$0xff]
  %s574 = scalar_lea.vmem %s42, 51
  %v575 = vld [vmem:[%s574] ss:$2 sm:$0xff]
  %s576 = scalar_lea.vmem %s42, 75
  %v577 = vld [vmem:[%s576] ss:$2 sm:$0xff]
  %s578 = scalar_lea.vmem %s42, 99
  %v579 = vld [vmem:[%s578] ss:$2 sm:$0xff]
  %s580 = scalar_lea.vmem %s42, 123
  %v581 = vld [vmem:[%s580] ss:$2 sm:$0xff]
  %s582 = scalar_lea.vmem %s42, 147
  %v583 = vld [vmem:[%s582] ss:$2 sm:$0xff]
  %s584 = scalar_lea.vmem %s42, 171
  %v585 = vld [vmem:[%s584] ss:$2 sm:$0xff]
  %s586 = scalar_lea.vmem %s42, 195
  %v587 = vld [vmem:[%s586] ss:$2 sm:$0xff]
  %s588 = scalar_lea.vmem %s42, 219
  %v589 = vld [vmem:[%s588] ss:$2 sm:$0xff]
  %s590 = scalar_lea.vmem %s42, 243
  %v591 = vld [vmem:[%s590] ss:$2 sm:$0xff]
  %s592 = scalar_lea.vmem %s42, 267
  %v593 = vld [vmem:[%s592] ss:$2 sm:$0xff]
  %s594 = scalar_lea.vmem %s42, 291
  %v595 = vld [vmem:[%s594] ss:$2 sm:$0xff]
  %s596 = scalar_lea.vmem %s42, 315
  %v597 = vld [vmem:[%s596] ss:$2 sm:$0xff]
  %s598 = scalar_lea.vmem %s42, 339
  %v599 = vld [vmem:[%s598] ss:$2 sm:$0xff]
  %s600 = scalar_lea.vmem %s42, 363
  %v601 = vld [vmem:[%s600] ss:$2 sm:$0xff]
  %s602 = scalar_lea.vmem %s91, 3
  %v603 = vld [vmem:[%s602] ss:$2 sm:$0xff]
  %s604 = scalar_lea.vmem %s91, 27
  %v605 = vld [vmem:[%s604] ss:$2 sm:$0xff]
  %s606 = scalar_lea.vmem %s91, 51
  %v607 = vld [vmem:[%s606] ss:$2 sm:$0xff]
  %s608 = scalar_lea.vmem %s91, 75
  %v609 = vld [vmem:[%s608] ss:$2 sm:$0xff]
  %s610 = scalar_lea.vmem %s91, 99
  %v611 = vld [vmem:[%s610] ss:$2 sm:$0xff]
  %s612 = scalar_lea.vmem %s91, 123
  %v613 = vld [vmem:[%s612] ss:$2 sm:$0xff]
  %s614 = scalar_lea.vmem %s91, 147
  %v615 = vld [vmem:[%s614] ss:$2 sm:$0xff]
  %s616 = scalar_lea.vmem %s91, 171
  %v617 = vld [vmem:[%s616] ss:$2 sm:$0xff]
  %s618 = scalar_lea.vmem %s91, 195
  %v619 = vld [vmem:[%s618] ss:$2 sm:$0xff]
  %s620 = scalar_lea.vmem %s91, 219
  %v621 = vld [vmem:[%s620] ss:$2 sm:$0xff]
  %s622 = scalar_lea.vmem %s91, 243
  %v623 = vld [vmem:[%s622] ss:$2 sm:$0xff]
  %s624 = scalar_lea.vmem %s91, 267
  %v625 = vld [vmem:[%s624] ss:$2 sm:$0xff]
  %s626 = scalar_lea.vmem %s91, 291
  %v627 = vld [vmem:[%s626] ss:$2 sm:$0xff]
  %s628 = scalar_lea.vmem %s91, 315
  %v629 = vld [vmem:[%s628] ss:$2 sm:$0xff]
  %s630 = scalar_lea.vmem %s91, 339
  %v631 = vld [vmem:[%s630] ss:$2 sm:$0xff]
  %s632 = scalar_lea.vmem %s91, 363
  %v633 = vld [vmem:[%s632] ss:$2 sm:$0xff]
  %v634 = vmax.f32 %v571, %v603
  %v635 = vmax.f32 %v573, %v605
  %v636 = vmax.f32 %v575, %v607
  %v637 = vmax.f32 %v577, %v609
  %v638 = vmax.f32 %v579, %v611
  %v639 = vmax.f32 %v581, %v613
  %v640 = vmax.f32 %v583, %v615
  %v641 = vmax.f32 %v585, %v617
  %v642 = vmax.f32 %v587, %v619
  %v643 = vmax.f32 %v589, %v621
  %v644 = vmax.f32 %v591, %v623
  %v645 = vmax.f32 %v593, %v625
  %v646 = vmax.f32 %v595, %v627
  %v647 = vmax.f32 %v597, %v629
  %v648 = vmax.f32 %v599, %v631
  %v649 = vmax.f32 %v601, %v633
  %v650 = vld [vmem:[%s1] sm:$0xff]
  %v651 = vld [vmem:[%s1 + $0x8] sm:$0xff]
  %v652 = vld [vmem:[%s1 + $0x10] sm:$0xff]
  %v653 = vld [vmem:[%s1 + $0x18] sm:$0xff]
  %v654 = vld [vmem:[%s1 + $0x20] sm:$0xff]
  %v655 = vld [vmem:[%s1 + $0x28] sm:$0xff]
  %v656 = vld [vmem:[%s1 + $0x30] sm:$0xff]
  %v657 = vld [vmem:[%s1 + $0x38] sm:$0xff]
  %v658 = vld [vmem:[%s1 + $0x40] sm:$0xff]
  %v659 = vld [vmem:[%s1 + $0x48] sm:$0xff]
  %v660 = vld [vmem:[%s1 + $0x50] sm:$0xff]
  %v661 = vld [vmem:[%s1 + $0x58] sm:$0xff]
  %v662 = vld [vmem:[%s1 + $0x60] sm:$0xff]
  %v663 = vld [vmem:[%s1 + $0x68] sm:$0xff]
  %v664 = vld [vmem:[%s1 + $0x70] sm:$0xff]
  %v665 = vld [vmem:[%s1 + $0x78] sm:$0xff]
  %v666 = vmax.f32 %v650, %v554
  %v667 = vmax.f32 %v651, %v555
  %v668 = vmax.f32 %v652, %v556
  %v669 = vmax.f32 %v653, %v557
  %v670 = vmax.f32 %v654, %v558
  %v671 = vmax.f32 %v655, %v559
  %v672 = vmax.f32 %v656, %v560
  %v673 = vmax.f32 %v657, %v561
  %v674 = vmax.f32 %v658, %v562
  %v675 = vmax.f32 %v659, %v563
  %v676 = vmax.f32 %v660, %v564
  %v677 = vmax.f32 %v661, %v565
  %v678 = vmax.f32 %v662, %v566
  %v679 = vmax.f32 %v663, %v567
  %v680 = vmax.f32 %v664, %v568
  %v681 = vmax.f32 %v665, %v569
  %682 = vst [vmem:[%s1] sm:$0xff] %v666
  %683 = vst [vmem:[%s1 + $0x8] sm:$0xff] %v667
  %684 = vst [vmem:[%s1 + $0x10] sm:$0xff] %v668
  %685 = vst [vmem:[%s1 + $0x18] sm:$0xff] %v669
  %686 = vst [vmem:[%s1 + $0x20] sm:$0xff] %v670
  %687 = vst [vmem:[%s1 + $0x28] sm:$0xff] %v671
  %688 = vst [vmem:[%s1 + $0x30] sm:$0xff] %v672
  %689 = vst [vmem:[%s1 + $0x38] sm:$0xff] %v673
  %690 = vst [vmem:[%s1 + $0x40] sm:$0xff] %v674
  %691 = vst [vmem:[%s1 + $0x48] sm:$0xff] %v675
  %692 = vst [vmem:[%s1 + $0x50] sm:$0xff] %v676
  %693 = vst [vmem:[%s1 + $0x58] sm:$0xff] %v677
  %694 = vst [vmem:[%s1 + $0x60] sm:$0xff] %v678
  %695 = vst [vmem:[%s1 + $0x68] sm:$0xff] %v679
  %696 = vst [vmem:[%s1 + $0x70] sm:$0xff] %v680
  %697 = vst [vmem:[%s1 + $0x78] sm:$0xff] %v681
  %v698 = vld [vmem:[%s2] sm:$0xff]
  %v699 = vld [vmem:[%s2 + $0x8] sm:$0xff]
  %v700 = vld [vmem:[%s2 + $0x10] sm:$0xff]
  %v701 = vld [vmem:[%s2 + $0x18] sm:$0xff]
  %v702 = vld [vmem:[%s2 + $0x20] sm:$0xff]
  %v703 = vld [vmem:[%s2 + $0x28] sm:$0xff]
  %v704 = vld [vmem:[%s2 + $0x30] sm:$0xff]
  %v705 = vld [vmem:[%s2 + $0x38] sm:$0xff]
  %v706 = vld [vmem:[%s2 + $0x40] sm:$0xff]
  %v707 = vld [vmem:[%s2 + $0x48] sm:$0xff]
  %v708 = vld [vmem:[%s2 + $0x50] sm:$0xff]
  %v709 = vld [vmem:[%s2 + $0x58] sm:$0xff]
  %v710 = vld [vmem:[%s2 + $0x60] sm:$0xff]
  %v711 = vld [vmem:[%s2 + $0x68] sm:$0xff]
  %v712 = vld [vmem:[%s2 + $0x70] sm:$0xff]
  %v713 = vld [vmem:[%s2 + $0x78] sm:$0xff]
  %v714 = vmax.f32 %v698, %v634
  %v715 = vmax.f32 %v699, %v635
  %v716 = vmax.f32 %v700, %v636
  %v717 = vmax.f32 %v701, %v637
  %v718 = vmax.f32 %v702, %v638
  %v719 = vmax.f32 %v703, %v639
  %v720 = vmax.f32 %v704, %v640
  %v721 = vmax.f32 %v705, %v641
  %v722 = vmax.f32 %v706, %v642
  %v723 = vmax.f32 %v707, %v643
  %v724 = vmax.f32 %v708, %v644
  %v725 = vmax.f32 %v709, %v645
  %v726 = vmax.f32 %v710, %v646
  %v727 = vmax.f32 %v711, %v647
  %v728 = vmax.f32 %v712, %v648
  %v729 = vmax.f32 %v713, %v649
  %730 = vst [vmem:[%s2] sm:$0xff] %v714
  %731 = vst [vmem:[%s2 + $0x8] sm:$0xff] %v715
  %732 = vst [vmem:[%s2 + $0x10] sm:$0xff] %v716
  %733 = vst [vmem:[%s2 + $0x18] sm:$0xff] %v717
  %734 = vst [vmem:[%s2 + $0x20] sm:$0xff] %v718
  %735 = vst [vmem:[%s2 + $0x28] sm:$0xff] %v719
  %736 = vst [vmem:[%s2 + $0x30] sm:$0xff] %v720
  %737 = vst [vmem:[%s2 + $0x38] sm:$0xff] %v721
  %738 = vst [vmem:[%s2 + $0x40] sm:$0xff] %v722
  %739 = vst [vmem:[%s2 + $0x48] sm:$0xff] %v723
  %740 = vst [vmem:[%s2 + $0x50] sm:$0xff] %v724
  %741 = vst [vmem:[%s2 + $0x58] sm:$0xff] %v725
  %742 = vst [vmem:[%s2 + $0x60] sm:$0xff] %v726
  %743 = vst [vmem:[%s2 + $0x68] sm:$0xff] %v727
  %744 = vst [vmem:[%s2 + $0x70] sm:$0xff] %v728
  %745 = vst [vmem:[%s2 + $0x78] sm:$0xff] %v729
  // Predicated region
  $region6: #{hex_maxpool2d.1} parent=0 // pred_check
    _
  $region7: #{hex_maxpool2d.1} parent=0 // pred_check_branch
    %747 = sbr.rel (0) target = $region9
  $region8: #{hex_maxpool2d.1} parent=0 // pred_region
    _
  $region9: #{hex_maxpool2d.1} parent=0 // pred_fallthru
    _
  // Predicated region
  $region10: #{hex_maxpool2d.1} parent=0 // pred_check
    _
  $region11: #{hex_maxpool2d.1} parent=0 // pred_check_branch
    %749 = sbr.rel (0) target = $region13
  $region12: #{hex_maxpool2d.1} parent=0 // pred_region
    _
  $region13: #{hex_maxpool2d.1} parent=0 // pred_fallthru
    _
  // Predicated region
  $region14: #{hex_maxpool2d.1} parent=0 // pred_check
    _
  $region15: #{hex_maxpool2d.1} parent=0 // pred_check_branch
    %751 = sbr.rel (0) target = $region17
  $region16: #{hex_maxpool2d.1} parent=0 // pred_region
    _
  $region17: #{hex_maxpool2d.1} parent=0 // pred_fallthru
    _
  // Predicated region
  $region18: #{hex_maxpool2d.1} parent=0 // pred_check
    _
  $region19: #{hex_maxpool2d.1} parent=0 // pred_check_branch
    %753 = sbr.rel (0) target = $region21
  $region20: #{hex_maxpool2d.1} parent=0 // pred_region
    _
  $region21: #{hex_maxpool2d.1} parent=0 // pred_fallthru
    _

</llo_original>
